<compile_context>
chip_gen: v5e
topology: v5e:2x2
jax: 0.10.0
libtpu: 0.0.40
codegen_flags: <defaults>
</compile_context>

<pallas_src>
import jax
import jax.numpy as jnp
from jax import lax
from jax.experimental import pallas as pl
from jax.experimental.pallas import tpu as pltpu

_LANES = 128
_SUBLANES = 8
_TARGET_TILE_BYTES = 4 * 1024 * 1024   # per image input, per pipeline buffer
_CHUNK_ROWS = 512                      # rows per in-kernel elementwise chunk


def _cdiv(a, b):
    return -(-a // b)


def _round_up(x, m):
    return ((x + m - 1) // m) * m


def _bce_with_logits_mean(x, z):
    # Numerically-stable BCE-with-logits (mean).  log(1 + e) with e = exp(-|x|)
    # in (0, 1] is identical to log1p(e) at f32 precision for this range.
    per = jnp.maximum(x, 0.0) - x * z + jnp.log(1.0 + jnp.exp(-jnp.abs(x)))
    return jnp.sum(per) * (1.0 / float(x.shape[0] * x.shape[1]))


def _make_kernel(tile_rows, chunk_rows, num_steps, valid_last):
    """Builds the kernel with all tiling decisions baked in as Python statics."""
    ragged = valid_last != tile_rows
    last = num_steps - 1

    def _accumulate(stego_ref, cover_ref, acc_ref, valid_rows):
        # valid_rows is a static Python int: rows of this tile holding real data.
        for lo in range(0, tile_rows, chunk_rows):
            if lo >= valid_rows:            # fully-padding chunk: skip (static)
                break
            s = stego_ref[lo:lo + chunk_rows, :].astype(jnp.float32)
            c = cover_ref[lo:lo + chunk_rows, :].astype(jnp.float32)
            d = s - c
            dd = d * d
            nv = valid_rows - lo
            if nv < chunk_rows:             # chunk straddles the valid boundary
                rid = lax.broadcasted_iota(jnp.int32, (chunk_rows, _LANES), 0)
                dd = jnp.where(rid < nv, dd, 0.0)
            # sublane-group partial sums -> (8, 128): pure VPU adds, no XLU
            acc_ref[...] += jnp.sum(dd.reshape(-1, _SUBLANES, _LANES), axis=0)

    def kernel(dec_ref,      # VMEM (B, L)            decoded message logits (resident)
               msg_ref,      # VMEM (B, L)            target messages in {0,1} (resident)
               stego_ref,    # VMEM (tile_rows, 128)  stego image tile
               cover_ref,    # VMEM (tile_rows, 128)  cover image tile
               msg_out_ref,  # VMEM (8, 128)          BCE mean (broadcast)
               img_out_ref,  # VMEM (8, 128)          un-normalized SSE lane partials
               acc_ref):     # VMEM (8, 128)          f32 accumulator (scratch)
        k = pl.program_id(0)

        @pl.when(k == 0)
        def _():
            acc_ref[...] = jnp.zeros_like(acc_ref)

        # ---- image-quality (MSE) branch: per-step work is VPU-only ----
        if ragged:
            @pl.when(k != last)
            def _():
                _accumulate(stego_ref, cover_ref, acc_ref, tile_rows)

            @pl.when(k == last)
            def _():
                _accumulate(stego_ref, cover_ref, acc_ref, valid_last)
        else:
            _accumulate(stego_ref, cover_ref, acc_ref, tile_rows)

        @pl.when(k == last)
        def _():
            # store the (8,128) lane partials; final reduce + /n in the wrapper
            img_out_ref[...] = acc_ref[...]

            # ---- message (BCE-with-logits, mean) branch: tiny (B, L) tensor,
            # computed exactly once, on the resident dec/msg blocks ----
            x = dec_ref[...].astype(jnp.float32)
            z = msg_ref[...].astype(jnp.float32)
            bce = _bce_with_logits_mean(x, z)
            msg_out_ref[...] = jnp.full(msg_out_ref.shape, bce, jnp.float32)

    return kernel


def adaptive_loss(outputs, targets, loss_weights):
    """JAX/Pallas equivalent of AdaptiveLoss.forward (message + image_quality)."""
    dec = outputs["decoded_messages"]      # (B, L) logits, native dtype
    msg = targets["messages"]              # (B, L) in {0,1}
    stego = outputs["stego_images"]        # (B, C, H, W)
    cover = targets["cover_images"]        # (B, C, H, W)

    n_img = int(stego.size)
    itemsize = jnp.dtype(stego.dtype).itemsize
    n_main = (n_img // _LANES) * _LANES
    rows = n_main // _LANES

    if rows == 0:
        # Degenerate tiny image (< 128 elements): nothing worth streaming.
        x = dec.astype(jnp.float32)
        z = msg.astype(jnp.float32)
        msg_loss = _bce_with_logits_mean(x, z)
        dimg = stego.astype(jnp.float32) - cover.astype(jnp.float32)
        img_loss = jnp.sum(dimg * dimg) / float(n_img)
    else:
        stego_flat = stego.reshape(-1)
        cover_flat = cover.reshape(-1)
        # Free bitcast when n_img % 128 == 0; only a <128-element tail ever
        # falls back to plain JAX (no full-tensor pad copy in any case).
        stego2d = (stego_flat if n_main == n_img else stego_flat[:n_main]
                   ).reshape(rows, _LANES)
        cover2d = (cover_flat if n_main == n_img else cover_flat[:n_main]
                   ).reshape(rows, _LANES)

        # ---- static tile sizing ----
        target_rows = max(
            _SUBLANES,
            (_TARGET_TILE_BYTES // (_LANES * itemsize)) // _SUBLANES * _SUBLANES)
        tile_rows = min(target_rows, _round_up(rows, _SUBLANES))
        chunk_rows = min(_CHUNK_ROWS, tile_rows)
        tile_rows = (tile_rows // chunk_rows) * chunk_rows
        num_steps = _cdiv(rows, tile_rows)
        valid_last = rows - (num_steps - 1) * tile_rows

        kernel = _make_kernel(tile_rows, chunk_rows, num_steps, valid_last)

        cost = pl.CostEstimate(
            flops=3 * n_main + 6 * int(dec.size),
            transcendentals=int(dec.size),
            bytes_accessed=(2 * n_main * itemsize
                            + int(dec.size) * jnp.dtype(dec.dtype).itemsize
                            + int(msg.size) * jnp.dtype(msg.dtype).itemsize
                            + 2 * _SUBLANES * _LANES * 4),
        )

        msg_part, img_part = pl.pallas_call(
            kernel,
            out_shape=(
                jax.ShapeDtypeStruct((_SUBLANES, _LANES), jnp.float32),
                jax.ShapeDtypeStruct((_SUBLANES, _LANES), jnp.float32),
            ),
            grid_spec=pltpu.PrefetchScalarGridSpec(
                num_scalar_prefetch=0,
                grid=(num_steps,),
                in_specs=[
                    # tiny, constant block index -> resident across the grid
                    pl.BlockSpec(dec.shape, lambda k: (0, 0)),
                    pl.BlockSpec(msg.shape, lambda k: (0, 0)),
                    # double-buffered, lane-dense image tiles
                    pl.BlockSpec((tile_rows, _LANES), lambda k: (k, 0)),
                    pl.BlockSpec((tile_rows, _LANES), lambda k: (k, 0)),
                ],
                out_specs=(
                    pl.BlockSpec((_SUBLANES, _LANES), lambda k: (0, 0)),
                    pl.BlockSpec((_SUBLANES, _LANES), lambda k: (0, 0)),
                ),
                scratch_shapes=[pltpu.VMEM((_SUBLANES, _LANES), jnp.float32)],
            ),
            compiler_params=pltpu.CompilerParams(
                dimension_semantics=("arbitrary",),
                vmem_limit_bytes=32 * 1024 * 1024,
            ),
            cost_estimate=cost,
        )(dec, msg, stego2d, cover2d)

        msg_loss = msg_part[0, 0]
        img_sse = jnp.sum(img_part)
        if n_main != n_img:
            ts = stego_flat[n_main:].astype(jnp.float32)
            tc = cover_flat[n_main:].astype(jnp.float32)
            img_sse = img_sse + jnp.sum((ts - tc) * (ts - tc))
        img_loss = img_sse / float(n_img)

    w_msg = loss_weights.get("message", 1.0)
    w_img = loss_weights.get("image_quality", 1.0)
    total = w_msg * msg_loss + w_img * img_loss

    # TODO(synk): update_weights() (EMA of gradient magnitudes) and
    # loss.retain_grad()/.item() are host-side autograd bookkeeping, not
    # forward compute; they have no Pallas equivalent.
    loss_dict = {
        "message_loss": msg_loss,
        "image_quality_loss": img_loss,
        "message_weight": w_msg,
        "image_quality_weight": w_img,
        "total": total,
        "individual_losses": {"message": msg_loss, "image_quality": img_loss},
    }
    return total, loss_dict


if __name__ == "__main__":
    key = jax.random.PRNGKey(0)
    k1, k2, k3, k4 = jax.random.split(key, 4)

    B, C, H, W = 2, 4, 16, 16   # NCHW like the PyTorch module
    L = 64                      # message length

    decoded_messages = jax.random.normal(k1, (B, L), dtype=jnp.float32)       # logits
    messages = (jax.random.uniform(k2, (B, L)) > 0.5).astype(jnp.float32)     # {0,1}
    cover_images = jax.random.uniform(k3, (B, C, H, W), dtype=jnp.float32)
    stego_images = cover_images + 0.05 * jax.random.normal(
        k4, (B, C, H, W), dtype=jnp.float32)

    outputs = {"decoded_messages": decoded_messages, "stego_images": stego_images}
    targets = {"messages": messages, "cover_images": cover_images}

    # __init__ sets every loss weight to 1.0 (update_weights only changes them later)
    loss_weights = {"message": 1.0, "image_quality": 1.0}

    total, loss_dict = adaptive_loss(outputs, targets, loss_weights)
    jax.block_until_ready(total)

    # reference check in plain JAX (same stable BCE-with-logits formula)
    x, z = decoded_messages, messages
    bce = jnp.mean(jnp.maximum(x, 0.0) - x * z + jnp.log(1.0 + jnp.exp(-jnp.abs(x))))
    mse = jnp.mean((stego_images - cover_images) ** 2)
    ref_total = loss_weights["message"] * bce + loss_weights["image_quality"] * mse
    assert jnp.allclose(total, ref_total, rtol=1e-5, atol=1e-6), (total, ref_total)
    assert jnp.allclose(loss_dict["message_loss"], bce, rtol=1e-5, atol=1e-6)
    assert jnp.allclose(loss_dict["image_quality_loss"], mse, rtol=1e-5, atol=1e-6)

    print("KERNEL_OK")
</pallas_src>

<mosaic_0001>
module attributes {stable_mosaic.version = 11 : i64} {
  func.func @kernel(%arg0: i32, %arg1: memref<2x64xf32, #tpu.memory_space<vmem>>, %arg2: memref<2x64xf32, #tpu.memory_space<vmem>>, %arg3: memref<16x128xf32, #tpu.memory_space<vmem>>, %arg4: memref<16x128xf32, #tpu.memory_space<vmem>>, %arg5: memref<8x128xf32, #tpu.memory_space<vmem>>, %arg6: memref<8x128xf32, #tpu.memory_space<vmem>>, %arg7: memref<8x128xf32, #tpu.memory_space<vmem>>) attributes {dimension_semantics = [#tpu.dimension_semantics<arbitrary>], iteration_bounds = array<i64: 1>, scalar_prefetch = 0 : i64, scratch_operands = 1 : i64, tpu.core_type = #tpu.core_type<tc>, window_params = [{pipeline_mode = #tpu.pipeline_mode<synchronous>, transform_indices = @transform_0, window_bounds = array<i64: 2, 64>}, {pipeline_mode = #tpu.pipeline_mode<synchronous>, transform_indices = @transform_1, window_bounds = array<i64: 2, 64>}, {transform_indices = @transform_2, window_bounds = array<i64: 16, 128>}, {transform_indices = @transform_3, window_bounds = array<i64: 16, 128>}, {pipeline_mode = #tpu.pipeline_mode<synchronous>, transform_indices = @transform_4, window_bounds = array<i64: 8, 128>}, {pipeline_mode = #tpu.pipeline_mode<synchronous>, transform_indices = @transform_5, window_bounds = array<i64: 8, 128>}]} {
    %c0_i32 = arith.constant 0 : i32
    %0 = arith.cmpi eq, %arg0, %c0_i32 : i32
    %1 = arith.extui %0 : i1 to i32
    %c0_i32_0 = arith.constant 0 : i32
    %2 = arith.cmpi ne, %1, %c0_i32_0 : i32
    scf.if %2 {
      %cst_10 = arith.constant 0.000000e+00 : f32
      %15 = vector.broadcast %cst_10 : f32 to vector<8x128xf32>
      %c0_11 = arith.constant 0 : index
      %c0_12 = arith.constant 0 : index
      %16 = vector.load %arg7[%c0_11, %c0_12] : memref<8x128xf32, #tpu.memory_space<vmem>>, vector<8x128xf32>
      tpu.vector_store %arg7[%c0_11, %c0_12], %15 {strides = array<i32>} : memref<8x128xf32, #tpu.memory_space<vmem>>, vector<8x128xf32>,
    } else {
    }
    %c0 = arith.constant 0 : index
    %c0_1 = arith.constant 0 : index
    %3 = vector.load %arg3[%c0, %c0_1] : memref<16x128xf32, #tpu.memory_space<vmem>>, vector<16x128xf32>
    %c0_2 = arith.constant 0 : index
    %c0_3 = arith.constant 0 : index
    %4 = vector.load %arg4[%c0_2, %c0_3] : memref<16x128xf32, #tpu.memory_space<vmem>>, vector<16x128xf32>
    %5 = arith.subf %3, %4 : vector<16x128xf32>
    %6 = arith.mulf %5, %5 : vector<16x128xf32>
    %c0_4 = arith.constant 0 : index
    %c0_5 = arith.constant 0 : index
    %7 = vector.load %arg7[%c0_4, %c0_5] : memref<8x128xf32, #tpu.memory_space<vmem>>, vector<8x128xf32>
    %8 = vector.shape_cast %6 : vector<16x128xf32> to vector<2x8x128xf32>
    %cst = arith.constant dense<0.000000e+00> : vector<8x128xf32>
    %9 = vector.multi_reduction <add>, %8, %cst [0] : vector<2x8x128xf32> to vector<8x128xf32>
    %10 = arith.addf %7, %9 : vector<8x128xf32>
    %c0_6 = arith.constant 0 : index
    %c0_7 = arith.constant 0 : index
    %11 = vector.load %arg7[%c0_6, %c0_7] : memref<8x128xf32, #tpu.memory_space<vmem>>, vector<8x128xf32>
    tpu.vector_store %arg7[%c0_6, %c0_7], %10 {strides = array<i32>} : memref<8x128xf32, #tpu.memory_space<vmem>>, vector<8x128xf32>,
    %c0_i32_8 = arith.constant 0 : i32
    %12 = arith.cmpi eq, %arg0, %c0_i32_8 : i32
    %13 = arith.extui %12 : i1 to i32
    %c0_i32_9 = arith.constant 0 : i32
    %14 = arith.cmpi ne, %13, %c0_i32_9 : i32
    scf.if %14 {
      %c0_10 = arith.constant 0 : index
      %c0_11 = arith.constant 0 : index
      %15 = vector.load %arg7[%c0_10, %c0_11] : memref<8x128xf32, #tpu.memory_space<vmem>>, vector<8x128xf32>
      %c0_12 = arith.constant 0 : index
      %c0_13 = arith.constant 0 : index
      %16 = vector.load %arg6[%c0_12, %c0_13] : memref<8x128xf32, #tpu.memory_space<vmem>>, vector<8x128xf32>
      tpu.vector_store %arg6[%c0_12, %c0_13], %15 {strides = array<i32>} : memref<8x128xf32, #tpu.memory_space<vmem>>, vector<8x128xf32>,
      %c0_14 = arith.constant 0 : index
      %c0_15 = arith.constant 0 : index
      %17 = vector.load %arg1[%c0_14, %c0_15] : memref<2x64xf32, #tpu.memory_space<vmem>>, vector<2x64xf32>
      %c0_16 = arith.constant 0 : index
      %c0_17 = arith.constant 0 : index
      %18 = vector.load %arg2[%c0_16, %c0_17] : memref<2x64xf32, #tpu.memory_space<vmem>>, vector<2x64xf32>
      %cst_18 = arith.constant 0.000000e+00 : f32
      %19 = vector.broadcast %cst_18 : f32 to vector<2x64xf32>
      %20 = arith.maximumf %17, %19 : vector<2x64xf32>
      %21 = arith.mulf %17, %18 : vector<2x64xf32>
      %22 = arith.subf %20, %21 : vector<2x64xf32>
      %23 = math.absf %17 : vector<2x64xf32>
      %cst_19 = arith.constant 0.000000e+00 : f32
      %24 = vector.broadcast %cst_19 : f32 to vector<2x64xf32>
      %25 = arith.subf %24, %23 : vector<2x64xf32>
      %26 = math.exp %25 : vector<2x64xf32>
      %cst_20 = arith.constant 1.000000e+00 : f32
      %27 = vector.broadcast %cst_20 : f32 to vector<2x64xf32>
      %28 = arith.addf %27, %26 : vector<2x64xf32>
      %29 = math.log %28 : vector<2x64xf32>
      %30 = arith.addf %22, %29 : vector<2x64xf32>
      %31 = vector.shape_cast %30 : vector<2x64xf32> to vector<1x2x64xf32>
      %cst_21 = arith.constant dense<0.000000e+00> : vector<1xf32>
      %32 = vector.multi_reduction <add>, %31, %cst_21 [1, 2] : vector<1x2x64xf32> to vector<1xf32>
      %33 = vector.shape_cast %32 : vector<1xf32> to vector<1x1x1xf32>
      %34 = vector.extract %33[0, 0, 0] : f32 from vector<1x1x1xf32>
      %cst_22 = arith.constant 7.812500e-03 : f32
      %35 = arith.mulf %34, %cst_22 : f32
      %36 = vector.broadcast %35 : f32 to vector<8x128xf32>
      %c0_23 = arith.constant 0 : index
      %c0_24 = arith.constant 0 : index
      %37 = vector.load %arg5[%c0_23, %c0_24] : memref<8x128xf32, #tpu.memory_space<vmem>>, vector<8x128xf32>
      tpu.vector_store %arg5[%c0_23, %c0_24], %36 {strides = array<i32>} : memref<8x128xf32, #tpu.memory_space<vmem>>, vector<8x128xf32>,
    } else {
    }
    return
  }
  func.func @transform_0(%arg0: i32) -> (i32, i32) {
    %c0_i32 = arith.constant 0 : i32
    %c0_i32_0 = arith.constant 0 : i32
    %c0_i32_1 = arith.constant 0 : i32
    return %c0_i32, %c0_i32_0 : i32, i32
  }
  func.func @transform_1(%arg0: i32) -> (i32, i32) {
    %c0_i32 = arith.constant 0 : i32
    %c0_i32_0 = arith.constant 0 : i32
    %c0_i32_1 = arith.constant 0 : i32
    return %c0_i32, %c0_i32_0 : i32, i32
  }
  func.func @transform_2(%arg0: i32) -> (i32, i32) {
    %c0_i32 = arith.constant 0 : i32
    %c0_i32_0 = arith.constant 0 : i32
    return %arg0, %c0_i32 : i32, i32
  }
  func.func @transform_3(%arg0: i32) -> (i32, i32) {
    %c0_i32 = arith.constant 0 : i32
    %c0_i32_0 = arith.constant 0 : i32
    return %arg0, %c0_i32 : i32, i32
  }
  func.func @transform_4(%arg0: i32) -> (i32, i32) {
    %c0_i32 = arith.constant 0 : i32
    %c0_i32_0 = arith.constant 0 : i32
    %c0_i32_1 = arith.constant 0 : i32
    return %c0_i32, %c0_i32_0 : i32, i32
  }
  func.func @transform_5(%arg0: i32) -> (i32, i32) {
    %c0_i32 = arith.constant 0 : i32
    %c0_i32_0 = arith.constant 0 : i32
    %c0_i32_1 = arith.constant 0 : i32
    return %c0_i32, %c0_i32_0 : i32, i32
  }
}

</mosaic_0001>

<llo_original>
// kernel: tpu_custom_call.1
$region0: #{tpu_custom_call.1}
  #allocation0 [shape = 'u32[]', space=smem, size = 0x4, offset = 0x4, fixed_abs, tag = 'smem constant byte address 0x4 - core index']
  #allocation1 [shape = 'u32[72,128]{1,0:T(1,128)}', space=vmem, size = 0x9000, scoped, tag = 'internal scratch']
  #allocation2 [shape = 'f32[8,128]{1,0:T(8,128)}', space=vmem, size = 0x1000, scoped, tag = 'scratch operand']
  %s0 = inlined_call_operand.hbm [shape: f32[2,64], index: 0, kind: input, shape index: {}]
  %s1 = inlined_call_operand.hbm [shape: f32[2,64], index: 1, kind: input, shape index: {}]
  %s2 = inlined_call_operand.hbm [shape: f32[16,128], index: 2, kind: input, shape index: {}]
  %s3 = inlined_call_operand.hbm [shape: f32[16,128], index: 3, kind: input, shape index: {}]
  %s4 = inlined_call_operand.hbm [shape: f32[8,128], index: 4, kind: output, shape index: {0}]
  %s5 = inlined_call_operand.hbm [shape: f32[8,128], index: 5, kind: output, shape index: {1}]
  %6 = xla_tuple %s4, %s5
  %s7 = sld [smem:[#allocation0]]
  $region58: #{tpu_custom_call.1} parent=0
    _
  %s9 = ssub.s32 1, %s7
  %s10 = scalar_select 0, %s9, %s7
  $region1: #{tpu_custom_call.1} parent=0
    #allocation3 [shape = 'u8[1024]{0}', space=vmem, size = 0x400, scoped, tag = 'input window, operand 0, single buffered']
    #allocation4 [shape = 's32[1]{0}', space=sflag, size = 0x4, scoped, tag = 'scoped memory for tpu_custom_call.1']
    #allocation5 [shape = 's32[1]{0}', space=sflag, size = 0x4, scoped, tag = 'scoped memory for tpu_custom_call.1']
    #allocation6 [shape = 'u8[1024]{0}', space=vmem, size = 0x400, scoped, tag = 'input window, operand 1, single buffered']
    #allocation7 [shape = 's32[1]{0}', space=sflag, size = 0x4, scoped, tag = 'scoped memory for tpu_custom_call.1']
    #allocation8 [shape = 'u8[8192]{0}', space=vmem, size = 0x2000, scoped, tag = 'input window, operand 2, single buffered']
    #allocation9 [shape = 'u8[8192]{0}', space=vmem, size = 0x2000, scoped, tag = 'input window, operand 3, single buffered']
    #allocation10 [shape = 's32[1]{0}', space=sflag, size = 0x4, scoped, tag = 'scoped memory for tpu_custom_call.1']
    #allocation11 [shape = 'u8[4096]{0}', space=vmem, size = 0x1000, scoped, tag = 'output window, operand 0, single buffered']
    #allocation12 [shape = 'u8[4096]{0}', space=vmem, size = 0x1000, scoped, tag = 'output window, operand 1, single buffered']
    #allocation13 [shape = 's32[1]{0}', space=sflag, size = 0x4, scoped, tag = 'scoped memory for tpu_custom_call.1']
    %11 = vsyncpa [#allocation4], 0
    %12 = vsyncpa [#allocation7], 0
    %13 = vsyncpa [#allocation10], 0
    %14 = vsyncpa [#allocation5], 0
    %15 = vsyncpa [#allocation13], 0
    // Predicated region
    $region2: #{tpu_custom_call.1} parent=1 // pred_check
      _
    $region3: #{tpu_custom_call.1} parent=1 // pred_check_branch
      %17 = sbr.rel (0) target = $region5
    $region4: #{tpu_custom_call.1} parent=1 // pred_region
      %19 = vsyncadd [#allocation4], 0
      %s21 = sshll.u32 %s0, 4
      %s22 = int_to_ptr.hbm [resolvable:$true] %s21
      %s23 = sshll.u32 [#allocation3], 4
      %s24 = int_to_ptr.vmem [resolvable:$true] %s23
      %26 = dma.hbm_to_vmem [thread:$0]  %s22, 32, %s24, [#allocation4]
    $region5: #{tpu_custom_call.1} parent=1 // pred_fallthru
      _
    // Predicated region
    $region6: #{tpu_custom_call.1} parent=1 // pred_check
      _
    $region7: #{tpu_custom_call.1} parent=1 // pred_check_branch
      %28 = sbr.rel (0) target = $region9
    $region8: #{tpu_custom_call.1} parent=1 // pred_region
      %30 = vsyncadd [#allocation7], 0
      %s32 = sshll.u32 %s1, 4
      %s33 = int_to_ptr.hbm [resolvable:$true] %s32
      %s34 = sshll.u32 [#allocation6], 4
      %s35 = int_to_ptr.vmem [resolvable:$true] %s34
      %37 = dma.hbm_to_vmem [thread:$0]  %s33, 32, %s35, [#allocation7]
    $region9: #{tpu_custom_call.1} parent=1 // pred_fallthru
      _
    // Predicated region
    $region10: #{tpu_custom_call.1} parent=1 // pred_check
      _
    $region11: #{tpu_custom_call.1} parent=1 // pred_check_branch
      %39 = sbr.rel (0) target = $region13
    $region12: #{tpu_custom_call.1} parent=1 // pred_region
      %41 = vsyncadd [#allocation7], 0
      %s42 = sshll.u32 %s2, 4
      %s43 = int_to_ptr.hbm [resolvable:$true] %s42
      %s44 = sshll.u32 [#allocation8], 4
      %s45 = int_to_ptr.vmem [resolvable:$true] %s44
      %50 = dma.hbm_to_vmem [thread:$0]  %s43, 256, %s45, [#allocation7], 128, 128, 8
    $region13: #{tpu_custom_call.1} parent=1 // pred_fallthru
      _
    // Predicated region
    $region14: #{tpu_custom_call.1} parent=1 // pred_check
      _
    $region15: #{tpu_custom_call.1} parent=1 // pred_check_branch
      %52 = sbr.rel (0) target = $region17
    $region16: #{tpu_custom_call.1} parent=1 // pred_region
      %54 = vsyncadd [#allocation10], 0
      %s55 = sshll.u32 %s3, 4
      %s56 = int_to_ptr.hbm [resolvable:$true] %s55
      %s57 = sshll.u32 [#allocation9], 4
      %s58 = int_to_ptr.vmem [resolvable:$true] %s57
      %63 = dma.hbm_to_vmem [thread:$0]  %s56, 256, %s58, [#allocation10], 128, 128, 8
    $region17: #{tpu_custom_call.1} parent=1 // pred_fallthru
      _
    // Predicated region
    $region18: #{tpu_custom_call.1} parent=1 // pred_check
      _
    $region19: #{tpu_custom_call.1} parent=1 // pred_check_branch
      %65 = sbr.rel (0) target = $region21
    $region20: #{tpu_custom_call.1} parent=1 // pred_region
      %67 = dma.done [#allocation4], 32
    $region21: #{tpu_custom_call.1} parent=1 // pred_fallthru
      _
    // Predicated region
    $region22: #{tpu_custom_call.1} parent=1 // pred_check
      _
    $region23: #{tpu_custom_call.1} parent=1 // pred_check_branch
      %69 = sbr.rel (0) target = $region25
    $region24: #{tpu_custom_call.1} parent=1 // pred_region
      %71 = dma.done [#allocation7], 32
    $region25: #{tpu_custom_call.1} parent=1 // pred_fallthru
      _
    // Predicated region
    $region26: #{tpu_custom_call.1} parent=1 // pred_check
      _
    $region27: #{tpu_custom_call.1} parent=1 // pred_check_branch
      %73 = sbr.rel (0) target = $region29
    $region28: #{tpu_custom_call.1} parent=1 // pred_region
      %75 = dma.done [#allocation7], 256
    $region29: #{tpu_custom_call.1} parent=1 // pred_fallthru
      _
    // Predicated region
    $region30: #{tpu_custom_call.1} parent=1 // pred_check
      _
    $region31: #{tpu_custom_call.1} parent=1 // pred_check_branch
      %77 = sbr.rel (0) target = $region33
    $region32: #{tpu_custom_call.1} parent=1 // pred_region
      %79 = dma.done [#allocation10], 256
    $region33: #{tpu_custom_call.1} parent=1 // pred_fallthru
      _
    %p80 = scmp.eq.s32.totalorder 0, 0
    // Predicated region
    $region34: #{tpu_custom_call.1} parent=1 // pred_check
      %p81 = pneg %p80
    $region35: #{tpu_custom_call.1} parent=1 // pred_check_branch
      %83 = sbr.rel (%p81) target = $region37
    $region36: #{tpu_custom_call.1} parent=1 // pred_region
      %84 = vst [vmem:[#allocation2] sm:$0xff] 0.0
    $region37: #{tpu_custom_call.1} parent=1 // pred_fallthru
      _
    %v85 = vld [vmem:[#allocation8] sm:$0xff]
    %v86 = vld [vmem:[#allocation8 + $0x8] sm:$0xff]
    %v87 = vld [vmem:[#allocation9] sm:$0xff]
    %v88 = vld [vmem:[#allocation9 + $0x8] sm:$0xff]
    %v89 = vsub.f32 %v85, %v87
    %v90 = vsub.f32 %v86, %v88
    %v91 = vmul.f32 %v89, %v89
    %v92 = vmul.f32 %v90, %v90
    %v93 = vld [vmem:[#allocation2] sm:$0xff]
    %v94 = vadd.f32 %v91, %v92
    %v95 = vadd.f32 %v93, %v94
    %96 = vst [vmem:[#allocation2] sm:$0xff] %v95
    // Predicated region
    $region38: #{tpu_custom_call.1} parent=1 // pred_check
      %p97 = pneg %p80
    $region39: #{tpu_custom_call.1} parent=1 // pred_check_branch
      %99 = sbr.rel (%p97) target = $region41
    $region40: #{tpu_custom_call.1} parent=1 // pred_region
      %v100 = vld [vmem:[#allocation2] sm:$0xff]
      %101 = vst [vmem:[#allocation12] sm:$0xff] %v100
      %v102 = vld [vmem:[#allocation3] sm:$0x3]
      %v103 = vld [vmem:[#allocation6] sm:$0x3]
      %v104 = vmax.f32 %v102, 0.0
      %v105 = vmul.f32 %v102, %v103
      %v106 = vsub.f32 %v104, %v105
      %v107 = vand.u32 2147483647, %v102
      %v108 = vsub.f32 0.0, %v107
      %v109 = vmul.f32 %v108, 1.442695
      %v110 = vpow.pop %v109
      %v111 = vadd.f32 %v110, 1.0
      %v112 = vlog2.pop %v111
      %v113 = vmul.f32 %v112, 0.6931472
      %v114 = vadd.f32 %v106, %v113
      %vm115 = vcmask 517120
      %v116 = vsel %vm115, %v114, 0.0
      %117 = vadd.xlane.f32.xlu0 %v116
      %v118 = vpop.xlane.xlu0 %117
      %v119 = vrot.slane %v118, 4
      %v120 = vadd.f32 %v118, %v119
      %v121 = vrot.slane %v120, 2
      %v122 = vadd.f32 %v120, %v121
      %v123 = vrot.slane %v122, 1
      %v124 = vadd.f32 %v122, %v123
      %s125 = vtos %v124
      %s126 = smul.f32 %s125, 0.0078125
      %v127 = vstv %s126
      %128 = vst [vmem:[#allocation11] sm:$0xff] %v127
    $region41: #{tpu_custom_call.1} parent=1 // pred_fallthru
      _
    // Predicated region
    $region42: #{tpu_custom_call.1} parent=1 // pred_check
      _
    $region43: #{tpu_custom_call.1} parent=1 // pred_check_branch
      %130 = sbr.rel (0) target = $region45
    $region44: #{tpu_custom_call.1} parent=1 // pred_region
      %132 = vsyncadd [#allocation5], 0
      %s134 = sshll.u32 [#allocation11], 4
      %s135 = int_to_ptr.vmem [resolvable:$true] %s134
      %s136 = sshll.u32 %s4, 4
      %s137 = int_to_ptr.hbm [resolvable:$true] %s136
      %139 = dma.vmem_to_hbm [thread:$0]  %s135, 128, %s137, [#allocation5]
    $region45: #{tpu_custom_call.1} parent=1 // pred_fallthru
      _
    // Predicated region
    $region46: #{tpu_custom_call.1} parent=1 // pred_check
      _
    $region47: #{tpu_custom_call.1} parent=1 // pred_check_branch
      %141 = sbr.rel (0) target = $region49
    $region48: #{tpu_custom_call.1} parent=1 // pred_region
      %143 = vsyncadd [#allocation13], 0
      %s145 = sshll.u32 [#allocation12], 4
      %s146 = int_to_ptr.vmem [resolvable:$true] %s145
      %s147 = sshll.u32 %s5, 4
      %s148 = int_to_ptr.hbm [resolvable:$true] %s147
      %150 = dma.vmem_to_hbm [thread:$0]  %s146, 128, %s148, [#allocation13]
    $region49: #{tpu_custom_call.1} parent=1 // pred_fallthru
      _
    // Predicated region
    $region50: #{tpu_custom_call.1} parent=1 // pred_check
      _
    $region51: #{tpu_custom_call.1} parent=1 // pred_check_branch
      %152 = sbr.rel (0) target = $region53
    $region52: #{tpu_custom_call.1} parent=1 // pred_region
      %154 = dma.done [#allocation5], 128
    $region53: #{tpu_custom_call.1} parent=1 // pred_fallthru
      _
    // Predicated region
    $region54: #{tpu_custom_call.1} parent=1 // pred_check
      _
    $region55: #{tpu_custom_call.1} parent=1 // pred_check_branch
      %156 = sbr.rel (0) target = $region57
    $region56: #{tpu_custom_call.1} parent=1 // pred_region
      %158 = dma.done [#allocation13], 128
    $region57: #{tpu_custom_call.1} parent=1 // pred_fallthru
      _
    %159 = vsyncpa [#allocation4], 1
    %160 = vsyncpa [#allocation7], 1
    %161 = vsyncpa [#allocation10], 1
    %162 = vsyncpa [#allocation5], 1
    %163 = vsyncpa [#allocation13], 1

</llo_original>
